<compile_context>
chip_gen: v7x
topology: tpu7x:2x2x1
jax: 0.10.0
libtpu: 0.0.40
codegen_flags: <defaults>
</compile_context>

<pallas_src>
import functools
import math

import jax
import jax.numpy as jnp
from jax.experimental import pallas as pl
from jax.experimental.pallas import tpu as pltpu

NEG_SLOPE = 0.01  # nn.LeakyReLU default negative_slope


def _round_up(x, m):
    return ((x + m - 1) // m) * m


# ----------------------------- Pallas kernel ---------------------------------
def mlp_kernel(x_ref, w_ref, b_ref, out_ref, *, n_layers):
    """Fused MLP forward, everything VMEM-resident.

    x_ref  : (B_PAD, D_PAD)      f32   zero-padded input activations
    w_ref  : (L, D_PAD, D_PAD)   bf16  zero-padded weights, layer-major
    b_ref  : (L, B_PAD, D_PAD)   f32   zero-padded biases, pre-broadcast on sublanes
    out_ref: (B_PAD, D_PAD)      f32   lane-dense output slab
    """
    h = x_ref[...]                                          # (B_PAD, D_PAD) f32
    for i in range(n_layers):                               # static unrolled layer loop
        w = w_ref[i]                                        # (D_PAD, D_PAD) bf16, static index
        b = b_ref[i]                                        # (B_PAD, D_PAD) f32
        # bf16 x bf16 -> f32 accumulate: single MXU pass per layer.
        h = jnp.dot(h.astype(jnp.bfloat16), w,
                    preferred_element_type=jnp.float32) + b
        # TODO(synk): nn.Dropout(p=0.1) inside every Dense is identity at inference.
        if i < n_layers - 1:
            h = jnp.where(h > 0.0, h, NEG_SLOPE * h)        # hidden: LeakyReLU (f32)
        else:
            h = jnp.maximum(h, 0.0)                         # output: ReLU (f32)
    out_ref[...] = h                                        # full-width lane-dense store


# ----------------------------- parameter packing ------------------------------
def pack_params(weights, biases, batch):
    """Pack all layer params into two padded slabs (done once, reused per call)."""
    n_layers = len(weights)
    dims = [weights[0].shape[0]] + [w.shape[1] for w in weights]
    d_pad = _round_up(max(dims), 128)      # lane-aligned common feature width
    b_pad = _round_up(batch, 8)            # sublane-aligned batch

    w_packed = jnp.zeros((n_layers, d_pad, d_pad), jnp.bfloat16)
    b_packed = jnp.zeros((n_layers, b_pad, d_pad), jnp.float32)
    for i, (w, b) in enumerate(zip(weights, biases)):
        d_in, d_out = w.shape
        w_packed = w_packed.at[i, :d_in, :d_out].set(w.astype(jnp.bfloat16))
        b_bcast = jnp.broadcast_to(
            jnp.reshape(b, (1, d_out)).astype(jnp.float32), (b_pad, d_out))
        b_packed = b_packed.at[i, :, :d_out].set(b_bcast)

    meta = dict(dims=tuple(dims), d_pad=d_pad, b_pad=b_pad, n_layers=n_layers)
    return w_packed, b_packed, meta


# ----------------------------- forward wrapper --------------------------------
@functools.partial(jax.jit, static_argnames=("dims", "d_pad", "b_pad", "n_layers"))
def _mlp_forward_packed(x, w_packed, b_packed, *, dims, d_pad, b_pad, n_layers):
    batch, inp_dim = x.shape
    out_dim = dims[-1]

    x_padded = jnp.zeros((b_pad, d_pad), jnp.float32)
    x_padded = x_padded.at[:batch, :inp_dim].set(x.astype(jnp.float32))

    flops = 2 * batch * sum(dims[i] * dims[i + 1] for i in range(n_layers))
    bytes_accessed = (x_padded.size * 4 + w_packed.size * 2 + b_packed.size * 4
                      + b_pad * d_pad * 4)
    cost = pl.CostEstimate(flops=flops, transcendentals=0,
                           bytes_accessed=bytes_accessed)

    vmem = pl.BlockSpec(memory_space=pltpu.MemorySpace.VMEM)
    out_padded = pl.pallas_call(
        functools.partial(mlp_kernel, n_layers=n_layers),
        out_shape=jax.ShapeDtypeStruct((b_pad, d_pad), jnp.float32),
        in_specs=[vmem, vmem, vmem],
        out_specs=vmem,
        cost_estimate=cost,
    )(x_padded, w_packed, b_packed)
    return out_padded[:batch, :out_dim]


def mlp_forward(x, w_packed, b_packed, meta):
    """Fused MLP forward using pre-packed parameter slabs."""
    return _mlp_forward_packed(x, w_packed, b_packed, **meta)


# ----------------------------- parameters -------------------------------------
def make_params(key, dims):
    """dims = (inp_dim, *hidden_dims, out_dim); mirrors Dense.reset_parameters."""
    weights, biases = [], []
    keys = jax.random.split(key, 2 * (len(dims) - 1))
    for i in range(len(dims) - 1):
        fan_in, fan_out = dims[i], dims[i + 1]
        std = math.sqrt(2.0 / (fan_in + fan_out))       # xavier_normal_, gain=1
        w = std * jax.random.normal(keys[2 * i], (fan_in, fan_out), dtype=jnp.float32)
        bound = 1.0 / math.sqrt(fan_in)                 # default nn.Linear bias init
        b = jax.random.uniform(keys[2 * i + 1], (1, fan_out), dtype=jnp.float32,
                               minval=-bound, maxval=bound)
        weights.append(w)
        biases.append(b)
    return weights, biases


# ----------------------------- main --------------------------------------------
if __name__ == "__main__":
    BATCH = 8
    INP_DIM = 16
    HIDDEN_DIMS = (32, 32)
    OUT_DIM = 1

    key = jax.random.PRNGKey(0)
    kx, kp = jax.random.split(key)

    x = jax.random.normal(kx, (BATCH, INP_DIM), dtype=jnp.float32)
    weights, biases = make_params(kp, (INP_DIM,) + HIDDEN_DIMS + (OUT_DIM,))

    # Pack params ONCE; reuse the packed slabs across calls (amortizes weight DMA).
    w_packed, b_packed, meta = pack_params(weights, biases, BATCH)

    out = jax.block_until_ready(mlp_forward(x, w_packed, b_packed, meta))

    # Reference 1: same math as the kernel (bf16 matmul inputs, f32 accumulation).
    ref_bf16 = x
    for i, (w, b) in enumerate(zip(weights, biases)):
        ref_bf16 = jnp.dot(ref_bf16.astype(jnp.bfloat16), w.astype(jnp.bfloat16),
                           preferred_element_type=jnp.float32) + b
        if i < len(weights) - 1:
            ref_bf16 = jnp.where(ref_bf16 > 0.0, ref_bf16, NEG_SLOPE * ref_bf16)
        else:
            ref_bf16 = jnp.maximum(ref_bf16, 0.0)

    # Reference 2: full-f32 semantics of the original PyTorch module (inference).
    ref_f32 = x
    for i, (w, b) in enumerate(zip(weights, biases)):
        ref_f32 = jnp.dot(ref_f32, w, precision=jax.lax.Precision.HIGHEST) + b
        if i < len(weights) - 1:
            ref_f32 = jnp.where(ref_f32 > 0.0, ref_f32, NEG_SLOPE * ref_f32)
        else:
            ref_f32 = jnp.maximum(ref_f32, 0.0)

    assert out.shape == (BATCH, OUT_DIM), out.shape
    assert jnp.all(jnp.isfinite(out))
    assert jnp.allclose(out, ref_bf16, atol=1e-3, rtol=1e-3), \
        float(jnp.max(jnp.abs(out - ref_bf16)))
    assert jnp.allclose(out, ref_f32, atol=5e-2, rtol=5e-2), \
        float(jnp.max(jnp.abs(out - ref_f32)))
    print("KERNEL_OK")
</pallas_src>

<mosaic_0001>
module attributes {stable_mosaic.version = 11 : i64} {
  func.func @mlp_kernel(%arg0: memref<8x128xf32, #tpu.memory_space<vmem>>, %arg1: memref<3x128x128xbf16, #tpu.memory_space<vmem>>, %arg2: memref<3x8x128xf32, #tpu.memory_space<vmem>>, %arg3: memref<8x128xf32, #tpu.memory_space<vmem>>) attributes {dimension_semantics = [], scalar_prefetch = 0 : i64, scratch_operands = 0 : i64, tpu.core_type = #tpu.core_type<tc>} {
    %c0 = arith.constant 0 : index
    %c0_0 = arith.constant 0 : index
    %0 = vector.load %arg0[%c0, %c0_0] : memref<8x128xf32, #tpu.memory_space<vmem>>, vector<8x128xf32>
    %c0_1 = arith.constant 0 : index
    %c0_2 = arith.constant 0 : index
    %c0_3 = arith.constant 0 : index
    %1 = vector.load %arg1[%c0_1, %c0_2, %c0_3] : memref<3x128x128xbf16, #tpu.memory_space<vmem>>, vector<1x128x128xbf16>
    %2 = vector.shape_cast %1 : vector<1x128x128xbf16> to vector<128x128xbf16>
    %c0_4 = arith.constant 0 : index
    %c0_5 = arith.constant 0 : index
    %c0_6 = arith.constant 0 : index
    %3 = vector.load %arg2[%c0_4, %c0_5, %c0_6] : memref<3x8x128xf32, #tpu.memory_space<vmem>>, vector<1x8x128xf32>
    %4 = vector.shape_cast %3 : vector<1x8x128xf32> to vector<8x128xf32>
    %5 = arith.truncf %0 : vector<8x128xf32> to vector<8x128xbf16>
    %cst = arith.constant dense<0.000000e+00> : vector<8x128xf32>
    %6 = tpu.matmul %5, %2, %cst {dimension_numbers = #tpu.dot_dimension_numbers<[1], [0], [0], [1], [0, 0, 1, 1], [], []>} : vector<8x128xbf16>, vector<128x128xbf16>, vector<8x128xf32> -> vector<8x128xf32>
    %7 = arith.addf %6, %4 : vector<8x128xf32>
    %cst_7 = arith.constant 0.000000e+00 : f32
    %8 = vector.broadcast %cst_7 : f32 to vector<8x128xf32>
    %9 = arith.cmpf ogt, %7, %8 : vector<8x128xf32>
    %cst_8 = arith.constant 0.00999999977 : f32
    %10 = vector.broadcast %cst_8 : f32 to vector<8x128xf32>
    %11 = arith.mulf %10, %7 : vector<8x128xf32>
    %12 = arith.select %9, %7, %11 : vector<8x128xi1>, vector<8x128xf32>
    %c1 = arith.constant 1 : index
    %c0_9 = arith.constant 0 : index
    %c0_10 = arith.constant 0 : index
    %13 = vector.load %arg1[%c1, %c0_9, %c0_10] : memref<3x128x128xbf16, #tpu.memory_space<vmem>>, vector<1x128x128xbf16>
    %14 = vector.shape_cast %13 : vector<1x128x128xbf16> to vector<128x128xbf16>
    %c1_11 = arith.constant 1 : index
    %c0_12 = arith.constant 0 : index
    %c0_13 = arith.constant 0 : index
    %15 = vector.load %arg2[%c1_11, %c0_12, %c0_13] : memref<3x8x128xf32, #tpu.memory_space<vmem>>, vector<1x8x128xf32>
    %16 = vector.shape_cast %15 : vector<1x8x128xf32> to vector<8x128xf32>
    %17 = arith.truncf %12 : vector<8x128xf32> to vector<8x128xbf16>
    %cst_14 = arith.constant dense<0.000000e+00> : vector<8x128xf32>
    %18 = tpu.matmul %17, %14, %cst_14 {dimension_numbers = #tpu.dot_dimension_numbers<[1], [0], [0], [1], [0, 0, 1, 1], [], []>} : vector<8x128xbf16>, vector<128x128xbf16>, vector<8x128xf32> -> vector<8x128xf32>
    %19 = arith.addf %18, %16 : vector<8x128xf32>
    %cst_15 = arith.constant 0.000000e+00 : f32
    %20 = vector.broadcast %cst_15 : f32 to vector<8x128xf32>
    %21 = arith.cmpf ogt, %19, %20 : vector<8x128xf32>
    %cst_16 = arith.constant 0.00999999977 : f32
    %22 = vector.broadcast %cst_16 : f32 to vector<8x128xf32>
    %23 = arith.mulf %22, %19 : vector<8x128xf32>
    %24 = arith.select %21, %19, %23 : vector<8x128xi1>, vector<8x128xf32>
    %c2 = arith.constant 2 : index
    %c0_17 = arith.constant 0 : index
    %c0_18 = arith.constant 0 : index
    %25 = vector.load %arg1[%c2, %c0_17, %c0_18] : memref<3x128x128xbf16, #tpu.memory_space<vmem>>, vector<1x128x128xbf16>
    %26 = vector.shape_cast %25 : vector<1x128x128xbf16> to vector<128x128xbf16>
    %c2_19 = arith.constant 2 : index
    %c0_20 = arith.constant 0 : index
    %c0_21 = arith.constant 0 : index
    %27 = vector.load %arg2[%c2_19, %c0_20, %c0_21] : memref<3x8x128xf32, #tpu.memory_space<vmem>>, vector<1x8x128xf32>
    %28 = vector.shape_cast %27 : vector<1x8x128xf32> to vector<8x128xf32>
    %29 = arith.truncf %24 : vector<8x128xf32> to vector<8x128xbf16>
    %cst_22 = arith.constant dense<0.000000e+00> : vector<8x128xf32>
    %30 = tpu.matmul %29, %26, %cst_22 {dimension_numbers = #tpu.dot_dimension_numbers<[1], [0], [0], [1], [0, 0, 1, 1], [], []>} : vector<8x128xbf16>, vector<128x128xbf16>, vector<8x128xf32> -> vector<8x128xf32>
    %31 = arith.addf %30, %28 : vector<8x128xf32>
    %cst_23 = arith.constant 0.000000e+00 : f32
    %32 = vector.broadcast %cst_23 : f32 to vector<8x128xf32>
    %33 = arith.maximumf %31, %32 : vector<8x128xf32>
    %c0_24 = arith.constant 0 : index
    %c0_25 = arith.constant 0 : index
    %34 = vector.load %arg3[%c0_24, %c0_25] : memref<8x128xf32, #tpu.memory_space<vmem>>, vector<8x128xf32>
    tpu.vector_store %arg3[%c0_24, %c0_25], %33 {strides = array<i32>} : memref<8x128xf32, #tpu.memory_space<vmem>>, vector<8x128xf32>,
    return
  }
}

</mosaic_0001>

<llo_original>
// kernel: _mlp_forward_packed.1
$region0: #{_mlp_forward_packed.1}
  #allocation0 [shape = 'u32[]', space=smem, size = 0x4, offset = 0x4, fixed_abs, tag = 'smem constant byte address 0x4 - core index']
  #allocation1 [shape = 'u32[144,128]{1,0:T(1,128)}', space=vmem, size = 0x12000, scoped, tag = 'internal scratch']
  %s0 = inlined_call_operand.vmem [shape: f32[8,128], index: 0, kind: input, shape index: {}]
  %s1 = inlined_call_operand.hbm [shape: bf16[3,128,128], index: 1, kind: input, shape index: {}]
  %s2 = inlined_call_operand.vmem [shape: f32[3,8,128], index: 2, kind: input, shape index: {}]
  %s3 = inlined_call_operand.vmem [shape: f32[8,128], index: 3, kind: output, shape index: {}]
  %s4 = sld [smem:[#allocation0]]
  $region26: #{_mlp_forward_packed.1} parent=0
    _
  %s6 = ssub.s32 1, %s4
  %s7 = scalar_select 0, %s6, %s4
  $region1: #{_mlp_forward_packed.1} parent=0
    #allocation2 [shape = 'u8[98304]{0}', space=vmem, size = 0x18000, scoped, tag = 'input window, operand 1, single buffered']
    #allocation3 [shape = 's32[1]{0}', space=sflag, size = 0x4, scoped, tag = 'scoped memory for _mlp_forward_packed.1']
    %8 = vsyncpa [#allocation3], 0
    // Predicated region
    $region2: #{_mlp_forward_packed.1} parent=1 // pred_check
      _
    $region3: #{_mlp_forward_packed.1} parent=1 // pred_check_branch
      %10 = sbr.rel (0) target = $region5
    $region4: #{_mlp_forward_packed.1} parent=1 // pred_region
      _
    $region5: #{_mlp_forward_packed.1} parent=1 // pred_fallthru
      _
    // Predicated region
    $region6: #{_mlp_forward_packed.1} parent=1 // pred_check
      _
    $region7: #{_mlp_forward_packed.1} parent=1 // pred_check_branch
      %12 = sbr.rel (0) target = $region9
    $region8: #{_mlp_forward_packed.1} parent=1 // pred_region
      %s14 = ssub.s32 3072, 3072
      %15 = vsyncadd [#allocation3], %s14
      %s16 = sshll.u32 [#allocation2], 4
      %s17 = int_to_ptr.vmem [resolvable:$true] %s16
      %22 = dma.hbm_to_vmem [thread:$0]  %s1, 3072, %s17, [#allocation3], 64, 64, 4
    $region9: #{_mlp_forward_packed.1} parent=1 // pred_fallthru
      _
    // Predicated region
    $region10: #{_mlp_forward_packed.1} parent=1 // pred_check
      _
    $region11: #{_mlp_forward_packed.1} parent=1 // pred_check_branch
      %24 = sbr.rel (0) target = $region13
    $region12: #{_mlp_forward_packed.1} parent=1 // pred_region
      _
    $region13: #{_mlp_forward_packed.1} parent=1 // pred_fallthru
      _
    // Predicated region
    $region14: #{_mlp_forward_packed.1} parent=1 // pred_check
      _
    $region15: #{_mlp_forward_packed.1} parent=1 // pred_check_branch
      %26 = sbr.rel (0) target = $region17
    $region16: #{_mlp_forward_packed.1} parent=1 // pred_region
      %27 = dma.done [#allocation3], 3072
    $region17: #{_mlp_forward_packed.1} parent=1 // pred_fallthru
      _
    %v29 = vld [vmem:[%s0] sm:$0xff]
    %v30 = vld [vmem:[#allocation2] sm:$0xf]
    %v31 = vld [vmem:[#allocation2 + $0x4] sm:$0xf]
    %v32 = vld [vmem:[#allocation2 + $0x8] sm:$0xf]
    %v33 = vld [vmem:[#allocation2 + $0xc] sm:$0xf]
    %v34 = vld [vmem:[#allocation2 + $0x10] sm:$0xf]
    %v35 = vld [vmem:[#allocation2 + $0x14] sm:$0xf]
    %v36 = vld [vmem:[#allocation2 + $0x18] sm:$0xf]
    %v37 = vld [vmem:[#allocation2 + $0x1c] sm:$0xf]
    %v38 = vld [vmem:[#allocation2 + $0x20] sm:$0xf]
    %v39 = vld [vmem:[#allocation2 + $0x24] sm:$0xf]
    %v40 = vld [vmem:[#allocation2 + $0x28] sm:$0xf]
    %v41 = vld [vmem:[#allocation2 + $0x2c] sm:$0xf]
    %v42 = vld [vmem:[#allocation2 + $0x30] sm:$0xf]
    %v43 = vld [vmem:[#allocation2 + $0x34] sm:$0xf]
    %v44 = vld [vmem:[#allocation2 + $0x38] sm:$0xf]
    %v45 = vld [vmem:[#allocation2 + $0x3c] sm:$0xf]
    %v46 = vld [vmem:[%s2] sm:$0xff]
    %v47 = vpack.c.bf16 %v29, %v29
    %v64 = vunpack.c.l.b16 %v30
    %v65 = vunpack.c.l.b16 %v31
    %v66 = vunpack.c.l.b16 %v32
    %v67 = vunpack.c.l.b16 %v33
    %v68 = vunpack.c.l.b16 %v34
    %v69 = vunpack.c.l.b16 %v35
    %v70 = vunpack.c.l.b16 %v36
    %v71 = vunpack.c.l.b16 %v37
    %v72 = vunpack.c.l.b16 %v38
    %v73 = vunpack.c.l.b16 %v39
    %v74 = vunpack.c.l.b16 %v40
    %v75 = vunpack.c.l.b16 %v41
    %v76 = vunpack.c.l.b16 %v42
    %v77 = vunpack.c.l.b16 %v43
    %v78 = vunpack.c.l.b16 %v44
    %v79 = vunpack.c.l.b16 %v45
    %v80 = vpack.c.b16 %v65, %v64
    %v81 = vpack.c.b16 %v67, %v66
    %v82 = vpack.c.b16 %v69, %v68
    %v83 = vpack.c.b16 %v71, %v70
    %v84 = vpack.c.b16 %v73, %v72
    %v85 = vpack.c.b16 %v75, %v74
    %v86 = vpack.c.b16 %v77, %v76
    %v87 = vpack.c.b16 %v79, %v78
    %96 = vmatprep.subr.bf16.mxu0 0
    %97 = vmatpush1.bf16.msra.mxu0 %v80
    %98 = vmatprep.subr.bf16.mxu0 0
    %99 = vmatpush1.bf16.msra.mxu0 %v81
    %100 = vmatprep.subr.bf16.mxu0 0
    %101 = vmatpush1.bf16.msra.mxu0 %v82
    %102 = vmatprep.subr.bf16.mxu0 0
    %103 = vmatpush1.bf16.msra.mxu0 %v83
    %104 = vmatprep.subr.bf16.mxu0 0
    %105 = vmatpush1.bf16.msra.mxu0 %v84
    %106 = vmatprep.subr.bf16.mxu0 0
    %107 = vmatpush1.bf16.msra.mxu0 %v85
    %108 = vmatprep.subr.bf16.mxu0 0
    %109 = vmatpush1.bf16.msra.mxu0 %v86
    %110 = vmatprep.subr.bf16.mxu0 0
    %111 = vmatpush1.bf16.msra.mxu0 %v87
    %112 = vmatprep.subr.bf16.mxu0 0
    %113 = vmatpush1.bf16.msra.mxu0 0
    %114 = vmatprep.subr.bf16.mxu0 0
    %115 = vmatpush1.bf16.msra.mxu0 0
    %116 = vmatprep.subr.bf16.mxu0 0
    %117 = vmatpush1.bf16.msra.mxu0 0
    %118 = vmatprep.subr.bf16.mxu0 0
    %119 = vmatpush1.bf16.msra.mxu0 0
    %120 = vmatprep.subr.bf16.mxu0 0
    %121 = vmatpush1.bf16.msra.mxu0 0
    %122 = vmatprep.subr.bf16.mxu0 0
    %123 = vmatpush1.bf16.msra.mxu0 0
    %124 = vmatprep.subr.bf16.mxu0 0
    %125 = vmatpush1.bf16.msra.mxu0 0
    %126 = vmatprep.subr.bf16.mxu0 0
    %127 = vmatpush1.bf16.msra.mxu0 0
    %128 = vmatprep.mubr.bf16.mxu0 0
    %129 = vmatmul.mubr.bf16.gmra.mrb[0].mxu0 %v47
    %v130 = vpop.f32.mrb[0].mxu0
    %v131 = vadd.f32 %v46, %v130
    %v132 = vpop.f32.mrb[0].mxu0
    %v133 = vpop.f32.mrb[0].mxu0
    %v134 = vpop.f32.mrb[0].mxu0
    %135 = vdwg.mxu0
    %vm136 = vcmp.gt.f32.partialorder %v131, 0.0
    %v137 = vmul.f32 %v131, 0.01
    %v138 = vsel %vm136, %v131, %v137
    %s139 = scalar_lea.vmem [#allocation2], 64
    %v140 = vld [vmem:[%s139] sm:$0xf]
    %v141 = vld [vmem:[%s139 + $0x4] sm:$0xf]
    %v142 = vld [vmem:[%s139 + $0x8] sm:$0xf]
    %v143 = vld [vmem:[%s139 + $0xc] sm:$0xf]
    %v144 = vld [vmem:[%s139 + $0x10] sm:$0xf]
    %v145 = vld [vmem:[%s139 + $0x14] sm:$0xf]
    %v146 = vld [vmem:[%s139 + $0x18] sm:$0xf]
    %v147 = vld [vmem:[%s139 + $0x1c] sm:$0xf]
    %v148 = vld [vmem:[%s139 + $0x20] sm:$0xf]
    %v149 = vld [vmem:[%s139 + $0x24] sm:$0xf]
    %v150 = vld [vmem:[%s139 + $0x28] sm:$0xf]
    %v151 = vld [vmem:[%s139 + $0x2c] sm:$0xf]
    %v152 = vld [vmem:[%s139 + $0x30] sm:$0xf]
    %v153 = vld [vmem:[%s139 + $0x34] sm:$0xf]
    %v154 = vld [vmem:[%s139 + $0x38] sm:$0xf]
    %v155 = vld [vmem:[%s139 + $0x3c] sm:$0xf]
    %s156 = scalar_lea.vmem %s2, 8
    %v157 = vld [vmem:[%s156] sm:$0xff]
    %v158 = vpack.c.bf16 %v138, %v138
    %v175 = vunpack.c.l.b16 %v140
    %v176 = vunpack.c.l.b16 %v141
    %v177 = vunpack.c.l.b16 %v142
    %v178 = vunpack.c.l.b16 %v143
    %v179 = vunpack.c.l.b16 %v144
    %v180 = vunpack.c.l.b16 %v145
    %v181 = vunpack.c.l.b16 %v146
    %v182 = vunpack.c.l.b16 %v147
    %v183 = vunpack.c.l.b16 %v148
    %v184 = vunpack.c.l.b16 %v149
    %v185 = vunpack.c.l.b16 %v150
    %v186 = vunpack.c.l.b16 %v151
    %v187 = vunpack.c.l.b16 %v152
    %v188 = vunpack.c.l.b16 %v153
    %v189 = vunpack.c.l.b16 %v154
    %v190 = vunpack.c.l.b16 %v155
    %v191 = vpack.c.b16 %v176, %v175
    %v192 = vpack.c.b16 %v178, %v177
    %v193 = vpack.c.b16 %v180, %v179
    %v194 = vpack.c.b16 %v182, %v181
    %v195 = vpack.c.b16 %v184, %v183
    %v196 = vpack.c.b16 %v186, %v185
    %v197 = vpack.c.b16 %v188, %v187
    %v198 = vpack.c.b16 %v190, %v189
    %207 = vmatprep.subr.bf16.mxu0 0
    %208 = vmatpush1.bf16.msra.mxu0 %v191
    %209 = vmatprep.subr.bf16.mxu0 0
    %210 = vmatpush1.bf16.msra.mxu0 %v192
    %211 = vmatprep.subr.bf16.mxu0 0
    %212 = vmatpush1.bf16.msra.mxu0 %v193
    %213 = vmatprep.subr.bf16.mxu0 0
    %214 = vmatpush1.bf16.msra.mxu0 %v194
    %215 = vmatprep.subr.bf16.mxu0 0
    %216 = vmatpush1.bf16.msra.mxu0 %v195
    %217 = vmatprep.subr.bf16.mxu0 0
    %218 = vmatpush1.bf16.msra.mxu0 %v196
    %219 = vmatprep.subr.bf16.mxu0 0
    %220 = vmatpush1.bf16.msra.mxu0 %v197
    %221 = vmatprep.subr.bf16.mxu0 0
    %222 = vmatpush1.bf16.msra.mxu0 %v198
    %223 = vmatprep.subr.bf16.mxu0 0
    %224 = vmatpush1.bf16.msra.mxu0 0
    %225 = vmatprep.subr.bf16.mxu0 0
    %226 = vmatpush1.bf16.msra.mxu0 0
    %227 = vmatprep.subr.bf16.mxu0 0
    %228 = vmatpush1.bf16.msra.mxu0 0
    %229 = vmatprep.subr.bf16.mxu0 0
    %230 = vmatpush1.bf16.msra.mxu0 0
    %231 = vmatprep.subr.bf16.mxu0 0
    %232 = vmatpush1.bf16.msra.mxu0 0
    %233 = vmatprep.subr.bf16.mxu0 0
    %234 = vmatpush1.bf16.msra.mxu0 0
    %235 = vmatprep.subr.bf16.mxu0 0
    %236 = vmatpush1.bf16.msra.mxu0 0
    %237 = vmatprep.subr.bf16.mxu0 0
    %238 = vmatpush1.bf16.msra.mxu0 0
    %239 = vmatprep.mubr.bf16.mxu0 0
    %240 = vmatmul.mubr.bf16.gmra.mrb[0].mxu0 %v158
    %v241 = vpop.f32.mrb[0].mxu0
    %v242 = vadd.f32 %v157, %v241
    %v243 = vpop.f32.mrb[0].mxu0
    %v244 = vpop.f32.mrb[0].mxu0
    %v245 = vpop.f32.mrb[0].mxu0
    %246 = vdwg.mxu0
    %vm247 = vcmp.gt.f32.partialorder %v242, 0.0
    %v248 = vmul.f32 %v242, 0.01
    %v249 = vsel %vm247, %v242, %v248
    %s250 = scalar_lea.vmem [#allocation2], 128
    %v251 = vld [vmem:[%s250] sm:$0xf]
    %v252 = vld [vmem:[%s250 + $0x4] sm:$0xf]
    %v253 = vld [vmem:[%s250 + $0x8] sm:$0xf]
    %v254 = vld [vmem:[%s250 + $0xc] sm:$0xf]
    %v255 = vld [vmem:[%s250 + $0x10] sm:$0xf]
    %v256 = vld [vmem:[%s250 + $0x14] sm:$0xf]
    %v257 = vld [vmem:[%s250 + $0x18] sm:$0xf]
    %v258 = vld [vmem:[%s250 + $0x1c] sm:$0xf]
    %v259 = vld [vmem:[%s250 + $0x20] sm:$0xf]
    %v260 = vld [vmem:[%s250 + $0x24] sm:$0xf]
    %v261 = vld [vmem:[%s250 + $0x28] sm:$0xf]
    %v262 = vld [vmem:[%s250 + $0x2c] sm:$0xf]
    %v263 = vld [vmem:[%s250 + $0x30] sm:$0xf]
    %v264 = vld [vmem:[%s250 + $0x34] sm:$0xf]
    %v265 = vld [vmem:[%s250 + $0x38] sm:$0xf]
    %v266 = vld [vmem:[%s250 + $0x3c] sm:$0xf]
    %s267 = scalar_lea.vmem %s2, 16
    %v268 = vld [vmem:[%s267] sm:$0xff]
    %v269 = vpack.c.bf16 %v249, %v249
    %v286 = vunpack.c.l.b16 %v251
    %v287 = vunpack.c.l.b16 %v252
    %v288 = vunpack.c.l.b16 %v253
    %v289 = vunpack.c.l.b16 %v254
    %v290 = vunpack.c.l.b16 %v255
    %v291 = vunpack.c.l.b16 %v256
    %v292 = vunpack.c.l.b16 %v257
    %v293 = vunpack.c.l.b16 %v258
    %v294 = vunpack.c.l.b16 %v259
    %v295 = vunpack.c.l.b16 %v260
    %v296 = vunpack.c.l.b16 %v261
    %v297 = vunpack.c.l.b16 %v262
    %v298 = vunpack.c.l.b16 %v263
    %v299 = vunpack.c.l.b16 %v264
    %v300 = vunpack.c.l.b16 %v265
    %v301 = vunpack.c.l.b16 %v266
    %v302 = vpack.c.b16 %v287, %v286
    %v303 = vpack.c.b16 %v289, %v288
    %v304 = vpack.c.b16 %v291, %v290
    %v305 = vpack.c.b16 %v293, %v292
    %v306 = vpack.c.b16 %v295, %v294
    %v307 = vpack.c.b16 %v297, %v296
    %v308 = vpack.c.b16 %v299, %v298
    %v309 = vpack.c.b16 %v301, %v300
    %318 = vmatprep.subr.bf16.mxu0 0
    %319 = vmatpush1.bf16.msra.mxu0 %v302
    %320 = vmatprep.subr.bf16.mxu0 0
    %321 = vmatpush1.bf16.msra.mxu0 %v303
    %322 = vmatprep.subr.bf16.mxu0 0
    %323 = vmatpush1.bf16.msra.mxu0 %v304
    %324 = vmatprep.subr.bf16.mxu0 0
    %325 = vmatpush1.bf16.msra.mxu0 %v305
    %326 = vmatprep.subr.bf16.mxu0 0
    %327 = vmatpush1.bf16.msra.mxu0 %v306
    %328 = vmatprep.subr.bf16.mxu0 0
    %329 = vmatpush1.bf16.msra.mxu0 %v307
    %330 = vmatprep.subr.bf16.mxu0 0
    %331 = vmatpush1.bf16.msra.mxu0 %v308
    %332 = vmatprep.subr.bf16.mxu0 0
    %333 = vmatpush1.bf16.msra.mxu0 %v309
    %334 = vmatprep.subr.bf16.mxu0 0
    %335 = vmatpush1.bf16.msra.mxu0 0
    %336 = vmatprep.subr.bf16.mxu0 0
    %337 = vmatpush1.bf16.msra.mxu0 0
    %338 = vmatprep.subr.bf16.mxu0 0
    %339 = vmatpush1.bf16.msra.mxu0 0
    %340 = vmatprep.subr.bf16.mxu0 0
    %341 = vmatpush1.bf16.msra.mxu0 0
    %342 = vmatprep.subr.bf16.mxu0 0
    %343 = vmatpush1.bf16.msra.mxu0 0
    %344 = vmatprep.subr.bf16.mxu0 0
    %345 = vmatpush1.bf16.msra.mxu0 0
    %346 = vmatprep.subr.bf16.mxu0 0
    %347 = vmatpush1.bf16.msra.mxu0 0
    %348 = vmatprep.subr.bf16.mxu0 0
    %349 = vmatpush1.bf16.msra.mxu0 0
    %350 = vmatprep.mubr.bf16.mxu0 0
    %351 = vmatmul.mubr.bf16.gmra.mrb[0].mxu0 %v269
    %v352 = vpop.f32.mrb[0].mxu0
    %v353 = vadd.f32 %v268, %v352
    %v354 = vpop.f32.mrb[0].mxu0
    %v355 = vpop.f32.mrb[0].mxu0
    %v356 = vpop.f32.mrb[0].mxu0
    %357 = vdwg.mxu0
    %v358 = vmax.f32 %v353, 0.0
    %359 = vst [vmem:[%s3] sm:$0xff] %v358
    // Predicated region
    $region18: #{_mlp_forward_packed.1} parent=1 // pred_check
      _
    $region19: #{_mlp_forward_packed.1} parent=1 // pred_check_branch
      %361 = sbr.rel (0) target = $region21
    $region20: #{_mlp_forward_packed.1} parent=1 // pred_region
      _
    $region21: #{_mlp_forward_packed.1} parent=1 // pred_fallthru
      _
    // Predicated region
    $region22: #{_mlp_forward_packed.1} parent=1 // pred_check
      _
    $region23: #{_mlp_forward_packed.1} parent=1 // pred_check_branch
      %363 = sbr.rel (0) target = $region25
    $region24: #{_mlp_forward_packed.1} parent=1 // pred_region
      _
    $region25: #{_mlp_forward_packed.1} parent=1 // pred_fallthru
      _
    %364 = vsyncpa [#allocation3], 1

</llo_original>
